<compile_context>
chip_gen: v6e
topology: v6e:2x2x1
jax: 0.10.0
libtpu: 0.0.40
codegen_flags: <defaults>
</compile_context>

<pallas_src>
import jax
import jax.numpy as jnp
from jax.experimental import pallas as pl
from jax.experimental.pallas import tpu as pltpu

_LANE = 128

# Per-channel block target.  C==1 double-buffers (1 in + 3 out) blocks
# -> ~16 MiB footprint at 2 MiB/channel; C==4 double-buffers (1 in + 1 out)
# -> ~8 MiB.  Both fit comfortably under the explicit scoped limit below and
# under v7x's 64 MiB physical VMEM.
_TARGET_BLOCK_BYTES = 2 * 1024 * 1024
# Hard clamp on the worst-case double-buffered footprint (1 in + 3 out).
_MAX_FOOTPRINT_BYTES = 32 * 1024 * 1024
_VMEM_LIMIT_BYTES = 48 * 1024 * 1024
# Below this the pallas_call fixed cost dominates moving the bytes; XLA can
# fuse the broadcast/slice into the consumer for free.
_SMALL_BYPASS_BYTES = 1024 * 1024


def _sublane(itemsize):
    # Native packed sublane granularity: (8,128) f32, (16,128) bf16/f16,
    # (32,128) int8/uint8/fp8.  Keeps stores unmasked for packed dtypes.
    return max(8, 32 // max(1, itemsize))


# ----------------------------- kernels ------------------------------------ #

def _repeat_kernel(x_ref, o_ref):
    # x_ref: (1, TR, TC) single source channel (DMA'd from HBM once per tile);
    # o_ref: (3, TR, TC).  Pure on-chip replication; lane-dense full-width vst.
    o_ref[...] = jnp.broadcast_to(x_ref[...], o_ref.shape)


def _copy2d_kernel(x_ref, o_ref):
    # Plain tiled copy (first 3*rows rows of the flat (4*rows, cols) view).
    o_ref[...] = x_ref[...]


# --------------------------- layout selection ------------------------------ #

def _choose_layout(h, w, itemsize, target_block_bytes):
    """Pick (rows, cols, row_tile) for a lane-dense (rows, cols) view of H*W.

    Returns None when no lane-dense, sublane-tileable layout exists; caller
    falls back to XLA (rare for real images, and XLA's copy is roofline-speed).
    """
    n = h * w
    sub = _sublane(itemsize)
    if n % _LANE != 0:
        return None

    cols = _LANE
    rows = n // cols
    if rows % sub != 0:
        return None

    # Grow cols (up to 512 lanes) only while rows stays sublane-divisible and
    # leaves at least 2 row tiles of work (v7x megacore split).
    while (cols < 4 * _LANE
           and n % (cols * 2) == 0
           and (n // (cols * 2)) % sub == 0
           and (n // (cols * 2)) >= 2 * sub):
        cols *= 2
        rows = n // cols

    bytes_per_row = cols * itemsize
    # Target block size, hard-clamped so the worst-case double-buffered
    # footprint 2*(1 in + 3 out)*block never exceeds _MAX_FOOTPRINT_BYTES.
    max_rows = max(sub, target_block_bytes // bytes_per_row)
    hard_max = max(sub, _MAX_FOOTPRINT_BYTES // (2 * 4 * bytes_per_row))
    max_rows = min(max_rows, hard_max)
    if rows >= 2 * sub:
        max_rows = min(max_rows, rows // 2)   # guarantee >= 2 grid steps

    row_tile = sub
    cand = (min(max_rows, rows) // sub) * sub
    while cand >= sub:
        if rows % cand == 0:
            row_tile = cand
            break
        cand -= sub
    return rows, cols, row_tile


# ------------------------------ launchers ---------------------------------- #

def _launch_repeat(x, rows, cols, row_tile):
    itemsize = x.dtype.itemsize
    return pl.pallas_call(
        _repeat_kernel,
        out_shape=jax.ShapeDtypeStruct((3, rows, cols), x.dtype),
        grid_spec=pltpu.PrefetchScalarGridSpec(
            num_scalar_prefetch=0,
            grid=(rows // row_tile,),
            in_specs=[pl.BlockSpec((1, row_tile, cols), lambda i: (0, i, 0))],
            out_specs=pl.BlockSpec((3, row_tile, cols), lambda i: (0, i, 0)),
        ),
        compiler_params=pltpu.CompilerParams(
            dimension_semantics=("parallel",),
            vmem_limit_bytes=_VMEM_LIMIT_BYTES,
        ),
        cost_estimate=pl.CostEstimate(
            flops=0, transcendentals=0,
            bytes_accessed=(1 + 3) * rows * cols * itemsize),
    )(x)


def _launch_slice(x2d, out_rows, cols, row_tile):
    # x2d: (4*rows, cols) flat view; copy its first out_rows = 3*rows rows.
    itemsize = x2d.dtype.itemsize
    return pl.pallas_call(
        _copy2d_kernel,
        out_shape=jax.ShapeDtypeStruct((out_rows, cols), x2d.dtype),
        grid_spec=pltpu.PrefetchScalarGridSpec(
            num_scalar_prefetch=0,
            grid=(out_rows // row_tile,),
            in_specs=[pl.BlockSpec((row_tile, cols), lambda i: (i, 0))],
            out_specs=pl.BlockSpec((row_tile, cols), lambda i: (i, 0)),
        ),
        compiler_params=pltpu.CompilerParams(
            dimension_semantics=("parallel",),
            vmem_limit_bytes=_VMEM_LIMIT_BYTES,
        ),
        cost_estimate=pl.CostEstimate(
            flops=0, transcendentals=0,
            bytes_accessed=2 * out_rows * cols * itemsize),
    )(x2d)


# ------------------------------- wrapper ----------------------------------- #

def _xla_fallback(image):
    c = image.shape[0]
    if c == 1:
        return jnp.broadcast_to(image, (3,) + image.shape[1:])
    return image[:3]


def to_three_channels(image, *, force_pallas=False,
                      target_block_bytes=_TARGET_BLOCK_BYTES):
    """JAX/Pallas equivalent of ToThreeChannels.forward; image is (C, H, W)."""
    c, h, w = image.shape

    if c not in (1, 4):
        # Identity: no copy, no kernel.
        return image

    itemsize = image.dtype.itemsize
    if not force_pallas and h * w * itemsize < _SMALL_BYPASS_BYTES:
        # Overhead-dominated regime: XLA fuses broadcast/slice for free.
        return _xla_fallback(image)

    layout = _choose_layout(h, w, itemsize, target_block_bytes)
    if layout is None:
        # No lane-dense sublane-tileable view: narrow/masked stores or a
        # single oversized block would hurt more than an XLA copy.
        return _xla_fallback(image)
    rows, cols, row_tile = layout

    if c == 1:
        out = _launch_repeat(image.reshape(1, rows, cols), rows, cols, row_tile)
        return out.reshape(3, h, w)

    # c == 4: the first 3 channels are the first 3*rows rows of the row-major
    # flat (4*rows, cols) view -> one contiguous, tiled 2D copy.
    out = _launch_slice(image.reshape(4 * rows, cols), 3 * rows, cols, row_tile)
    return out.reshape(3, h, w)


# ------------------------------ reference ---------------------------------- #

def _reference(image):
    c = image.shape[0]
    if c == 1:
        return jnp.tile(image, (3, 1, 1))
    elif c == 4:
        return image[:3]
    return image


if __name__ == "__main__":
    key = jax.random.PRNGKey(0)
    k1, k2, k3, k4, k5, k6 = jax.random.split(key, 6)

    img_1ch = jax.random.normal(k1, (1, 32, 128), dtype=jnp.float32)
    img_4ch = jax.random.normal(k2, (4, 32, 128), dtype=jnp.float32)
    img_3ch = jax.random.normal(k3, (3, 16, 16), dtype=jnp.float32)
    img_1ch_u8 = jax.random.randint(k4, (1, 64, 128), 0, 256).astype(jnp.uint8)
    img_4ch_bf16 = jax.random.normal(k5, (4, 64, 128), dtype=jnp.bfloat16)
    img_odd = jax.random.normal(k6, (4, 17, 30), dtype=jnp.float32)
    img_1ch_small = img_1ch[:, :16, :16]
    img_4ch_small = img_4ch[:, :16, :16]
    img_1ch_big = jax.random.normal(k1, (1, 128, 128), dtype=jnp.float32)

    # (image, force_pallas, target_block_bytes)
    cases = [
        (img_1ch, True, _TARGET_BLOCK_BYTES),       # repeat kernel, f32
        (img_4ch, True, _TARGET_BLOCK_BYTES),       # 2D-copy kernel, f32
        (img_3ch, False, _TARGET_BLOCK_BYTES),      # identity (no kernel)
        (img_1ch_u8, True, _TARGET_BLOCK_BYTES),    # repeat kernel, uint8 (sub=32)
        (img_4ch_bf16, True, _TARGET_BLOCK_BYTES),  # 2D-copy kernel, bf16 (sub=16)
        (img_odd, True, _TARGET_BLOCK_BYTES),       # non-lane-dense -> XLA fallback
        (img_1ch_small, False, _TARGET_BLOCK_BYTES),  # tiny-image XLA bypass
        (img_4ch_small, False, _TARGET_BLOCK_BYTES),  # tiny-image XLA bypass
        (img_1ch_big, True, 4096),                  # small blocks -> multi-step grid
    ]

    ok = True
    for img, force, tgt in cases:
        out = jax.block_until_ready(
            to_three_channels(img, force_pallas=force, target_block_bytes=tgt))
        ref = _reference(img)
        assert out.shape == ref.shape, (out.shape, ref.shape)
        assert out.dtype == ref.dtype, (out.dtype, ref.dtype)
        ok = ok and bool(jnp.array_equal(out, ref))

    if ok:
        print("KERNEL_OK")
</pallas_src>

<mosaic_0001>
module attributes {stable_mosaic.version = 11 : i64} {
  func.func @_repeat_kernel(%arg0: i32, %arg1: memref<1x8x256xf32, #tpu.memory_space<vmem>>, %arg2: memref<3x8x256xf32, #tpu.memory_space<vmem>>) attributes {dimension_semantics = [#tpu.dimension_semantics<parallel>], iteration_bounds = array<i64: 2>, scalar_prefetch = 0 : i64, scratch_operands = 0 : i64, tpu.core_type = #tpu.core_type<tc>, window_params = [{transform_indices = @transform_0, window_bounds = array<i64: 1, 8, 256>}, {transform_indices = @transform_1, window_bounds = array<i64: 3, 8, 256>}]} {
    %c0 = arith.constant 0 : index
    %c0_0 = arith.constant 0 : index
    %c0_1 = arith.constant 0 : index
    %0 = vector.load %arg1[%c0, %c0_0, %c0_1] : memref<1x8x256xf32, #tpu.memory_space<vmem>>, vector<1x8x256xf32>
    %1 = vector.shape_cast %0 : vector<1x8x256xf32> to vector<1x8x256xf32>
    %2 = vector.broadcast %1 : vector<1x8x256xf32> to vector<3x8x256xf32>
    %c0_2 = arith.constant 0 : index
    %c0_3 = arith.constant 0 : index
    %c0_4 = arith.constant 0 : index
    %3 = vector.load %arg2[%c0_2, %c0_3, %c0_4] : memref<3x8x256xf32, #tpu.memory_space<vmem>>, vector<3x8x256xf32>
    tpu.vector_store %arg2[%c0_2, %c0_3, %c0_4], %2 {strides = array<i32>} : memref<3x8x256xf32, #tpu.memory_space<vmem>>, vector<3x8x256xf32>,
    return
  }
  func.func @transform_0(%arg0: i32) -> (i32, i32, i32) {
    %c0_i32 = arith.constant 0 : i32
    %c0_i32_0 = arith.constant 0 : i32
    %c0_i32_1 = arith.constant 0 : i32
    return %c0_i32, %arg0, %c0_i32_0 : i32, i32, i32
  }
  func.func @transform_1(%arg0: i32) -> (i32, i32, i32) {
    %c0_i32 = arith.constant 0 : i32
    %c0_i32_0 = arith.constant 0 : i32
    %c0_i32_1 = arith.constant 0 : i32
    return %c0_i32, %arg0, %c0_i32_0 : i32, i32, i32
  }
}

</mosaic_0001>

<llo_original>
// kernel: tpu_custom_call.1
$region0: #{tpu_custom_call.1}
  #allocation0 [shape = 'u32[]', space=smem, size = 0x4, offset = 0x4, fixed_abs, tag = 'smem constant byte address 0x4 - core index']
  #allocation1 [shape = 'u32[144,128]{1,0:T(1,128)}', space=vmem, size = 0x12000, scoped, tag = 'internal scratch']
  %s0 = inlined_call_operand.hbm [shape: f32[1,16,256], index: 0, kind: input, shape index: {}]
  %s1 = inlined_call_operand.hbm [shape: f32[3,16,256], index: 1, kind: output, shape index: {}]
  %s2 = sld [smem:[#allocation0]]
  $region41: #{tpu_custom_call.1} parent=0
    _
  %s4 = ssub.s32 1, %s2
  %s5 = scalar_select 0, %s4, %s2
  $region1: #{tpu_custom_call.1} parent=0
    #allocation2 [shape = 'u8[16384]{0}', space=vmem, size = 0x4000, scoped, tag = 'input window, operand 0']
    #allocation3 [shape = 's32[2]{0}', space=sflag, size = 0x8, scoped, tag = 'scoped memory for tpu_custom_call.1']
    #allocation4 [shape = 's32[2]{0}', space=sflag, size = 0x8, scoped, tag = 'scoped memory for tpu_custom_call.1']
    #allocation5 [shape = 'u8[49152]{0}', space=vmem, size = 0xc000, scoped, tag = 'output window, operand 0']
    %6 = vsyncpa [#allocation3], 0
    %s7 = scalar_lea.sflag [#allocation3], 1
    %8 = vsyncpa %s7, 0
    %9 = vsyncpa [#allocation4], 0
    %s10 = scalar_lea.sflag [#allocation4], 1
    %11 = vsyncpa %s10, 0
    loop: start=0, step=1, limit=4
    $region2: #{tpu_custom_call.1} parent=1 // loop_pre_header
      _
    $region3: #{tpu_custom_call.1} parent=1 // loop_header
      %s13 = sphi 0, %s17
      %p14 = scmp.ge.s32.totalorder %s13, 4
      %s23 = sphi 0, %s25
      %s26 = sphi 0, %s23
      %s27 = sphi 0, %s26
      %s43 = sphi 0, %s27
      %s49 = sphi 0, %s51
      %s52 = sphi 0, %s49
      %s53 = sphi 0, %s52
      %s69 = sphi 0, %s53
    $region4: #{tpu_custom_call.1} parent=1 // loop_header_branch
      %16 = sbr.rel (%p14) target = $region8
    $region5: #{tpu_custom_call.1} parent=1 // loop_body
      %s18 = ssub.s32 %s13, 1
      %s19 = ssub.s32 %s13, 2
      %s20 = sadd.s32 %s13, 1
      %s21 = ssub.s32 %s13, %s20
      %p22 = scmp.eq.s32.totalorder %s21, 0
      %s24 = sadd.s32 %s23, 1
      %s25 = scalar_select %p22, %s23, %s24
      %p28 = pneg %p22
      %p29 = scmp.eq.s32.totalorder %s13, 1
      %p30 = por %p28, %p29
      %p31 = scmp.ne.s32.totalorder %s23, %s26
      %p32 = scmp.eq.s32.totalorder %s13, 0
      %p33 = por %p31, %p32
      %p34 = scmp.ne.s32.totalorder %s23, %s26
      %p35 = scmp.eq.s32.totalorder %s18, 1
      %p36 = por %p34, %p35
      %p37 = scmp.ne.s32.totalorder %s26, %s27
      %p38 = scmp.eq.s32.totalorder %s18, 0
      %p39 = por %p37, %p38
      %p40 = scmp.ne.s32.totalorder %s26, %s27
      %p41 = scmp.eq.s32.totalorder %s19, 1
      %p42 = por %p40, %p41
      %p44 = scmp.ne.s32.totalorder %s27, %s43
      %p45 = scmp.eq.s32.totalorder %s19, 0
      %p46 = por %p44, %p45
      %s47 = ssub.s32 %s13, %s20
      %p48 = scmp.eq.s32.totalorder %s47, 0
      %s50 = sadd.s32 %s49, 1
      %s51 = scalar_select %p48, %s49, %s50
      %p54 = pneg %p48
      %p55 = scmp.eq.s32.totalorder %s13, 1
      %p56 = por %p54, %p55
      %p57 = scmp.ne.s32.totalorder %s49, %s52
      %p58 = scmp.eq.s32.totalorder %s13, 0
      %p59 = por %p57, %p58
      %p60 = scmp.ne.s32.totalorder %s49, %s52
      %p61 = scmp.eq.s32.totalorder %s18, 1
      %p62 = por %p60, %p61
      %p63 = scmp.ne.s32.totalorder %s52, %s53
      %p64 = scmp.eq.s32.totalorder %s18, 0
      %p65 = por %p63, %p64
      %p66 = scmp.ne.s32.totalorder %s52, %s53
      %p67 = scmp.eq.s32.totalorder %s19, 1
      %p68 = por %p66, %p67
      %p70 = scmp.ne.s32.totalorder %s53, %s69
      %p71 = scmp.eq.s32.totalorder %s19, 0
      %p72 = por %p70, %p71
      %p73 = scmp.le.s32.totalorder 1, %s13
      %p74 = scmp.lt.s32.totalorder %s13, 3
      %p75 = pnand %p73, %p74
      %p76 = pneg %p75
      // Predicated region
      $region9: #{tpu_custom_call.1} parent=5 // pred_check
        _
      $region10: #{tpu_custom_call.1} parent=5 // pred_check_branch
        %78 = sbr.rel (%p75) target = $region12
      $region11: #{tpu_custom_call.1} parent=5 // pred_region
        %s79 = ssub.s32 %s13, 1
      $region12: #{tpu_custom_call.1} parent=5 // pred_fallthru
        _
      %p80 = scmp.lt.s32.totalorder %s13, 2
      // Predicated region
      $region13: #{tpu_custom_call.1} parent=5 // pred_check
        %p81 = pneg %p80
      $region14: #{tpu_custom_call.1} parent=5 // pred_check_branch
        %83 = sbr.rel (%p81) target = $region16
      $region15: #{tpu_custom_call.1} parent=5 // pred_region
        // Predicated region
        $region17: #{tpu_custom_call.1} parent=15 // pred_check
          %p84 = pneg %p33
        $region18: #{tpu_custom_call.1} parent=15 // pred_check_branch
          %86 = sbr.rel (%p84) target = $region20
        $region19: #{tpu_custom_call.1} parent=15 // pred_region
          %s87 = sand.u32 %s23, 1
          %s88 = scalar_lea.sflag [#allocation3], %s87
          %s89 = sand.u32 %s23, 1
          %s90 = smul.addr %s89, 16
          %s91 = scalar_lea.vmem [#allocation2], %s90
          %s93 = ssub.s32 256, 256
          %94 = vsyncadd %s88, %s93
          %s95 = smul.addr %s13, 2
          %s96 = smul.addr %s95, 128
          %s97 = scalar_lea.hbm %s0, %s96
          %s99 = sshll.u32 %s91, 4
          %s100 = int_to_ptr.vmem [resolvable:$true] %s99
          %102 = dma.hbm_to_vmem [thread:$0]  %s97, 256, %s100, %s88
        $region20: #{tpu_custom_call.1} parent=15 // pred_fallthru
          _
      $region16: #{tpu_custom_call.1} parent=5 // pred_fallthru
        _
      %p103 = scmp.le.s32.totalorder 1, %s13
      %p104 = scmp.lt.s32.totalorder %s13, 3
      %p105 = pnand %p103, %p104
      %p106 = pneg %p105
      // Predicated region
      $region21: #{tpu_custom_call.1} parent=5 // pred_check
        _
      $region22: #{tpu_custom_call.1} parent=5 // pred_check_branch
        %108 = sbr.rel (%p105) target = $region24
      $region23: #{tpu_custom_call.1} parent=5 // pred_region
        %s109 = ssub.s32 %s13, 1
        %s110 = sand.u32 %s26, 1
        %s111 = scalar_lea.sflag [#allocation3], %s110
        %s112 = sand.u32 %s26, 1
        %s113 = smul.addr %s112, 16
        %s114 = scalar_lea.vmem [#allocation2], %s113
        // Predicated region
        $region25: #{tpu_custom_call.1} parent=23 // pred_check
          %p115 = pneg %p39
        $region26: #{tpu_custom_call.1} parent=23 // pred_check_branch
          %117 = sbr.rel (%p115) target = $region28
        $region27: #{tpu_custom_call.1} parent=23 // pred_region
          %118 = dma.done %s111, 256
        $region28: #{tpu_custom_call.1} parent=23 // pred_fallthru
          _
        %s119 = sand.u32 %s26, 1
        %s120 = scalar_lea.sflag [#allocation3], %s119
        %s121 = sand.u32 %s26, 1
        %s122 = smul.addr %s121, 16
        %s123 = scalar_lea.vmem [#allocation2], %s122
        %p124 = pneg %p39
        %p125 = pneg %p36
        %p126 = pneg %p65
        %p127 = pneg %p62
        %s128 = sand.u32 %s52, 1
        %s129 = scalar_lea.sflag [#allocation4], %s128
        %s130 = sand.u32 %s52, 1
        %s131 = smul.addr %s130, 48
        %s132 = scalar_lea.vmem [#allocation5], %s131
        %v133 = vld [vmem:[%s114] sm:$0xff]
        %v134 = vld [vmem:[%s114 + $0x8] sm:$0xff]
        %135 = vst [vmem:[%s132] sm:$0xff] %v133
        %136 = vst [vmem:[%s132 + $0x8] sm:$0xff] %v134
        %137 = vst [vmem:[%s132 + $0x10] sm:$0xff] %v133
        %138 = vst [vmem:[%s132 + $0x18] sm:$0xff] %v134
        %139 = vst [vmem:[%s132 + $0x20] sm:$0xff] %v133
        %140 = vst [vmem:[%s132 + $0x28] sm:$0xff] %v134
        %s141 = sand.u32 %s52, 1
        %s142 = scalar_lea.sflag [#allocation4], %s141
        %s143 = sand.u32 %s52, 1
        %s144 = smul.addr %s143, 48
        %s145 = scalar_lea.vmem [#allocation5], %s144
        // Predicated region
        $region29: #{tpu_custom_call.1} parent=23 // pred_check
          %p146 = pneg %p62
        $region30: #{tpu_custom_call.1} parent=23 // pred_check_branch
          %148 = sbr.rel (%p146) target = $region32
        $region31: #{tpu_custom_call.1} parent=23 // pred_region
          %s150 = ssub.s32 768, 768
          %151 = vsyncadd %s142, %s150
          %s152 = smul.addr %s18, 2
          %s153 = smul.addr %s152, 128
          %s154 = scalar_lea.hbm %s1, %s153
          %s155 = sshll.u32 %s145, 4
          %s156 = int_to_ptr.vmem [resolvable:$true] %s155
          %161 = dma.vmem_to_hbm [thread:$0]  %s156, 768, %s154, %s142, 256, 512, 16
        $region32: #{tpu_custom_call.1} parent=23 // pred_fallthru
          _
      $region24: #{tpu_custom_call.1} parent=5 // pred_fallthru
        _
      %p162 = scmp.le.s32.totalorder 2, %s13
      // Predicated region
      $region33: #{tpu_custom_call.1} parent=5 // pred_check
        %p163 = pneg %p162
      $region34: #{tpu_custom_call.1} parent=5 // pred_check_branch
        %165 = sbr.rel (%p163) target = $region36
      $region35: #{tpu_custom_call.1} parent=5 // pred_region
        %s166 = ssub.s32 %s13, 2
        // Predicated region
        $region37: #{tpu_custom_call.1} parent=35 // pred_check
          %p167 = pneg %p68
        $region38: #{tpu_custom_call.1} parent=35 // pred_check_branch
          %169 = sbr.rel (%p167) target = $region40
        $region39: #{tpu_custom_call.1} parent=35 // pred_region
          %s170 = sand.u32 %s53, 1
          %s171 = scalar_lea.sflag [#allocation4], %s170
          %s172 = sand.u32 %s53, 1
          %s173 = smul.addr %s172, 48
          %s174 = scalar_lea.vmem [#allocation5], %s173
          %175 = dma.done %s171, 768
        $region40: #{tpu_custom_call.1} parent=35 // pred_fallthru
          _
      $region36: #{tpu_custom_call.1} parent=5 // pred_fallthru
        _
    $region6: #{tpu_custom_call.1} parent=1 // loop_footer
      %s17 = sadd.s32 1, %s13
    $region7: #{tpu_custom_call.1} parent=1 // loop_footer_branch
      %12 = sbr.rel target = $region3
    $region8: #{tpu_custom_call.1} parent=1 // loop_exit
      _
    %176 = vsyncpa [#allocation3], 1
    %s177 = scalar_lea.sflag [#allocation3], 1
    %178 = vsyncpa %s177, 1
    %179 = vsyncpa [#allocation4], 1
    %s180 = scalar_lea.sflag [#allocation4], 1
    %181 = vsyncpa %s180, 1

</llo_original>
